<compile_context>
chip_gen: v5e
topology: v5e:2x2
jax: 0.10.0
libtpu: 0.0.40
codegen_flags: <defaults>
</compile_context>

<pallas_src>
import functools
import math

import jax
import jax.numpy as jnp
from jax.experimental import pallas as pl
from jax.experimental.pallas import tpu as pltpu


def _cdiv(a, b):
    return -(-a // b)


def _round_up(a, b):
    return _cdiv(a, b) * b


def _log_softmax_last(logits):
    row_max = jnp.max(logits, axis=-1, keepdims=True)
    shifted = logits - row_max
    lse = jnp.log(jnp.sum(jnp.exp(shifted), axis=-1, keepdims=True))
    return shifted - lse


def _decoder_kernel(q_ref, k_ref, *rest, inv_sqrt_d, tanh_clipping, has_mask):
    """q: (TB, E) or (TB, L, E); k: (TB, E, S); mask (opt): (TB, S) / (TB, L, S)."""
    if has_mask:
        m_ref, o_ref = rest
    else:
        (o_ref,) = rest

    # Fold 1/sqrt(head_dim) into the tiny q tile (TB*L*E elems) instead of the
    # full logits tensor (TB*L*S elems).
    q = q_ref[...] * jnp.asarray(inv_sqrt_d, q_ref.dtype)
    squeeze_l = q.ndim == 2
    if squeeze_l:
        q = q[:, None, :]                                    # (TB, 1, E)

    # Canonical batched matmul: per batch (L, E) @ (E, S); S stays on lanes.
    logits = jnp.einsum("ble,bes->bls", q, k_ref[...],
                        preferred_element_type=jnp.float32)
    if squeeze_l:
        logits = logits[:, 0, :]                              # (TB, S)

    if tanh_clipping > 0:
        logits = jnp.tanh(logits) * tanh_clipping
    if has_mask:
        logits = jnp.where(m_ref[...] != 0, -jnp.inf, logits)
    o_ref[...] = _log_softmax_last(logits).astype(o_ref.dtype)


def _tpu_params():
    """(per-core VMEM bytes, TensorCores per chip), with safe fallbacks."""
    vmem_cap = 64 << 20            # conservative default (v7x per-TC)
    num_cores = 1
    try:
        info = pltpu.get_tpu_info()
        vmem_cap = int(getattr(info, "vmem_capacity_bytes", vmem_cap))
    except Exception:
        pass
    try:
        if "v7" in jax.devices()[0].device_kind.lower():
            num_cores = 2
    except Exception:
        pass
    return vmem_cap, num_cores


def _per_batch_vmem_bytes(L, S, E, q_bytes, k_bytes, o_bytes, has_mask):
    """Approx padded VMEM footprint (block + f32 temporaries) per batch row."""
    lane = lambda x: _round_up(x, 128)
    sub8 = lambda x: _round_up(x, 8)
    k = sub8(E) * lane(S) * k_bytes                           # dominant stream
    if L == 1:
        q = lane(E) * q_bytes
        m = lane(S) if has_mask else 0
        o = lane(S) * o_bytes
        tmp = 4 * lane(S) * 4
    else:
        q = sub8(L) * lane(E) * q_bytes
        m = sub8(L) * lane(S) if has_mask else 0
        o = sub8(L) * lane(S) * o_bytes
        tmp = 4 * sub8(L) * lane(S) * 4
    return q + k + m + o + tmp


def _choose_tb(n, per_batch_bytes, gran, vmem_cap, num_cores):
    # ~8 MiB blocks on 64 MiB-VMEM parts (v7x), ~16 MiB on 128 MiB parts
    # (v5e/v6e): big enough to amortize the ~0.35us/step grid overhead, small
    # enough that double-buffering stays well inside VMEM.
    budget = (16 << 20) if vmem_cap >= (96 << 20) else (8 << 20)
    tb = max(1, budget // max(per_batch_bytes, 1))
    if tb >= n:
        return n                               # full-batch block: always legal
    tb = max(gran, (tb // gran) * gran)        # sublane / int8-tile aligned
    # Megacore sharding only matters with >1 TensorCore per chip (v7x).
    while num_cores > 1 and tb > gran and _cdiv(n, tb) < num_cores:
        tb -= gran
    return max(min(tb, n), 1)


def simple_decoder(query, key, attn_mask=None, *, embed_dim, num_heads=1,
                   tanh_clipping=10.0, out_dtype=jnp.float32):
    """query: (L, N, E), key: (S, N, E), attn_mask: (N, L, S) bool or None.

    Returns log-probabilities (N, L, S), squeezed along dim 1 if L == 1
    (matching the PyTorch module's `log_prob.squeeze(1)`).
    """
    L, N, E = query.shape
    S, N2, E2 = key.shape
    assert E == embed_dim and E2 == embed_dim and N2 == N
    head_dim = embed_dim // num_heads
    assert head_dim * num_heads == embed_dim, "embed_dim must be divisible by num_heads"

    squeeze_l = (L == 1)
    has_mask = attn_mask is not None

    # ---- layout glue: one fused permutation of K, no padding passes ----
    q_arr = query.reshape(N, E) if squeeze_l else jnp.transpose(query, (1, 0, 2))
    k_arr = jnp.transpose(key, (1, 2, 0))                     # (N, E, S): S on lanes
    # TODO(synk): a fully copy-free K path would block the original (S, N, E)
    # array with BlockSpec((S, TB, E), lambda n: (0, n, 0)) and relayout in
    # VMEM; kept as one fused HBM permutation for robust Mosaic lowering.

    if has_mask:
        assert attn_mask.shape == (N, L, S)
        m_arr = attn_mask.astype(jnp.int8)                    # 4x less DMA than f32
        if squeeze_l:
            m_arr = m_arr.reshape(N, S)

    # ---- per-generation batch tiling ----
    q_bytes = jnp.dtype(query.dtype).itemsize
    k_bytes = jnp.dtype(key.dtype).itemsize
    o_bytes = jnp.dtype(out_dtype).itemsize
    per_batch = _per_batch_vmem_bytes(L, S, E, q_bytes, k_bytes, o_bytes, has_mask)
    vmem_cap, num_cores = _tpu_params()
    gran = (32 if has_mask else 8) if squeeze_l else 8        # int8 mask: 32-row tiles
    TB = _choose_tb(N, per_batch, gran, vmem_cap, num_cores)
    grid = (pl.cdiv(N, TB),)   # partial last block: OOB rows are write-masked

    if squeeze_l:
        in_specs = [pl.BlockSpec((TB, E), lambda n: (n, 0)),
                    pl.BlockSpec((TB, E, S), lambda n: (n, 0, 0))]
        out_spec = pl.BlockSpec((TB, S), lambda n: (n, 0))
        out_shape = jax.ShapeDtypeStruct((N, S), out_dtype)
        if has_mask:
            in_specs.append(pl.BlockSpec((TB, S), lambda n: (n, 0)))
    else:
        in_specs = [pl.BlockSpec((TB, L, E), lambda n: (n, 0, 0)),
                    pl.BlockSpec((TB, E, S), lambda n: (n, 0, 0))]
        out_spec = pl.BlockSpec((TB, L, S), lambda n: (n, 0, 0))
        out_shape = jax.ShapeDtypeStruct((N, L, S), out_dtype)
        if has_mask:
            in_specs.append(pl.BlockSpec((TB, L, S), lambda n: (n, 0, 0)))

    inputs = [q_arr, k_arr] + ([m_arr] if has_mask else [])
    kernel = functools.partial(_decoder_kernel,
                               inv_sqrt_d=1.0 / math.sqrt(head_dim),
                               tanh_clipping=float(tanh_clipping),
                               has_mask=has_mask)

    # VMEM limit = actual double-buffered estimate + headroom (no blanket clamp).
    est = 2 * TB * per_batch + (8 << 20)
    vmem_limit = int(min(max(est, 24 << 20), max(24 << 20, (vmem_cap * 3) // 4)))

    return pl.pallas_call(
        kernel,
        out_shape=out_shape,
        grid_spec=pltpu.PrefetchScalarGridSpec(
            num_scalar_prefetch=0,
            grid=grid,
            in_specs=in_specs,
            out_specs=out_spec,
        ),
        compiler_params=pltpu.CompilerParams(
            dimension_semantics=("parallel",),
            vmem_limit_bytes=vmem_limit),
    )(*inputs)


def _reference(query, key, attn_mask, *, num_heads, tanh_clipping):
    L, N, E = query.shape
    S = key.shape[0]
    head_dim = E // num_heads
    q = jnp.transpose(query.reshape(L, N, num_heads, head_dim), (2, 1, 0, 3))
    k = jnp.transpose(key.reshape(S, N, num_heads, head_dim), (2, 1, 0, 3))
    comp = jnp.einsum("hnld,hnsd->hnls", q, k) / math.sqrt(head_dim)
    logits = jnp.transpose(comp, (1, 2, 3, 0)).sum(-1)        # (N, L, S)
    if tanh_clipping > 0:
        logits = jnp.tanh(logits) * tanh_clipping
    if attn_mask is not None:
        logits = jnp.where(attn_mask, -jnp.inf, logits)
    log_prob = jax.nn.log_softmax(logits, axis=-1)
    if L == 1:
        log_prob = log_prob[:, 0, :]
    return log_prob


def _check(out, ref):
    assert out.shape == ref.shape, (out.shape, ref.shape)
    finite = jnp.isfinite(ref)
    assert bool(jnp.all(jnp.isfinite(out) == finite))
    assert bool(jnp.allclose(jnp.where(finite, out, 0.0),
                             jnp.where(finite, ref, 0.0),
                             atol=1e-5, rtol=1e-5))
    assert bool(jnp.all((out == -jnp.inf) == (ref == -jnp.inf)))


if __name__ == "__main__":
    configs = [
        # (N, L, S, E, H, use_mask)
        (2, 4, 8, 32, 4, True),     # L>1 masked path
        (5, 1, 200, 32, 2, True),   # L==1 masked path, S not a 128-multiple
        (4, 2, 128, 32, 1, False),  # L>1 no-mask path, lane-dense S
        (2, 1, 130, 32, 2, False),  # L==1 no-mask path, S not a 128-multiple
    ]
    rng = jax.random.PRNGKey(0)
    for (N, L, S, E, H, use_mask) in configs:
        rng, k0, k1, k2 = jax.random.split(rng, 4)
        query = jax.random.normal(k0, (L, N, E), dtype=jnp.float32)
        key = jax.random.normal(k1, (S, N, E), dtype=jnp.float32)
        attn_mask = None
        if use_mask:
            attn_mask = jax.random.bernoulli(k2, 0.3, (N, L, S))
            # Keep column 0 attendable so no row is fully masked (module asserts no NaNs).
            attn_mask = attn_mask.at[:, :, 0].set(False)

        out = simple_decoder(query, key, attn_mask,
                             embed_dim=E, num_heads=H, tanh_clipping=10.0)
        out = jax.block_until_ready(out)

        ref = _reference(query, key, attn_mask, num_heads=H, tanh_clipping=10.0)
        _check(out, ref)

    print("KERNEL_OK")
</pallas_src>

<mosaic_0001>
module attributes {stable_mosaic.version = 11 : i64} {
  func.func @_decoder_kernel(%arg0: i32, %arg1: memref<2x4x32xf32, #tpu.memory_space<vmem>>, %arg2: memref<2x32x8xf32, #tpu.memory_space<vmem>>, %arg3: memref<2x4x8xi8, #tpu.memory_space<vmem>>, %arg4: memref<2x4x8xf32, #tpu.memory_space<vmem>>) attributes {dimension_semantics = [#tpu.dimension_semantics<parallel>], iteration_bounds = array<i64: 1>, scalar_prefetch = 0 : i64, scratch_operands = 0 : i64, tpu.core_type = #tpu.core_type<tc>, window_params = [{transform_indices = @transform_0, window_bounds = array<i64: 2, 4, 32>}, {transform_indices = @transform_1, window_bounds = array<i64: 2, 32, 8>}, {transform_indices = @transform_2, window_bounds = array<i64: 2, 4, 8>}, {transform_indices = @transform_3, window_bounds = array<i64: 2, 4, 8>}]} {
    %c0 = arith.constant 0 : index
    %c0_0 = arith.constant 0 : index
    %c0_1 = arith.constant 0 : index
    %0 = vector.load %arg1[%c0, %c0_0, %c0_1] : memref<2x4x32xf32, #tpu.memory_space<vmem>>, vector<2x4x32xf32>
    %cst = arith.constant 0.353553385 : f32
    %1 = vector.broadcast %cst : f32 to vector<2x4x32xf32>
    %2 = arith.mulf %0, %1 : vector<2x4x32xf32>
    %c0_2 = arith.constant 0 : index
    %c0_3 = arith.constant 0 : index
    %c0_4 = arith.constant 0 : index
    %3 = vector.load %arg2[%c0_2, %c0_3, %c0_4] : memref<2x32x8xf32, #tpu.memory_space<vmem>>, vector<2x32x8xf32>
    "tpu.trace_start"() <{level = 10 : i32, message = "ble,bes->bls"}> : () -> ()
    %cst_5 = arith.constant dense<0.000000e+00> : vector<2x4x8xf32>
    %4 = tpu.matmul %2, %3, %cst_5 {dimension_numbers = #tpu.dot_dimension_numbers<[2], [1], [1], [2], [0, 0, 0, 1, 1, 2], [0], [0]>} : vector<2x4x32xf32>, vector<2x32x8xf32>, vector<2x4x8xf32> -> vector<2x4x8xf32>
    "tpu.trace_stop"() : () -> ()
    %5 = math.tanh %4 : vector<2x4x8xf32>
    %cst_6 = arith.constant 1.000000e+01 : f32
    %6 = vector.broadcast %cst_6 : f32 to vector<2x4x8xf32>
    %7 = arith.mulf %5, %6 : vector<2x4x8xf32>
    %c0_7 = arith.constant 0 : index
    %c0_8 = arith.constant 0 : index
    %c0_9 = arith.constant 0 : index
    %8 = vector.load %arg3[%c0_7, %c0_8, %c0_9] : memref<2x4x8xi8, #tpu.memory_space<vmem>>, vector<2x4x8xi8>
    %c0_i8 = arith.constant 0 : i8
    %9 = vector.broadcast %c0_i8 : i8 to vector<2x4x8xi8>
    %10 = arith.cmpi ne, %8, %9 : vector<2x4x8xi8>
    %cst_10 = arith.constant 0xFF800000 : f32
    %11 = vector.broadcast %cst_10 : f32 to vector<2x4x8xf32>
    %12 = arith.select %10, %11, %7 : vector<2x4x8xi1>, vector<2x4x8xf32>
    %cst_11 = arith.constant dense<0xFF800000> : vector<2x4xf32>
    %13 = vector.multi_reduction <maximumf>, %12, %cst_11 [2] : vector<2x4x8xf32> to vector<2x4xf32>
    %14 = vector.shape_cast %13 : vector<2x4xf32> to vector<2x4x1xf32>
    %15 = vector.broadcast %14 : vector<2x4x1xf32> to vector<2x4x8xf32>
    %16 = arith.subf %12, %15 : vector<2x4x8xf32>
    %17 = math.exp %16 : vector<2x4x8xf32>
    %cst_12 = arith.constant dense<0.000000e+00> : vector<2x4xf32>
    %18 = vector.multi_reduction <add>, %17, %cst_12 [2] : vector<2x4x8xf32> to vector<2x4xf32>
    %19 = vector.shape_cast %18 : vector<2x4xf32> to vector<2x4x1xf32>
    %20 = math.log %19 : vector<2x4x1xf32>
    %21 = vector.broadcast %20 : vector<2x4x1xf32> to vector<2x4x8xf32>
    %22 = arith.subf %16, %21 : vector<2x4x8xf32>
    %c0_13 = arith.constant 0 : index
    %c0_14 = arith.constant 0 : index
    %c0_15 = arith.constant 0 : index
    %23 = vector.load %arg4[%c0_13, %c0_14, %c0_15] : memref<2x4x8xf32, #tpu.memory_space<vmem>>, vector<2x4x8xf32>
    tpu.vector_store %arg4[%c0_13, %c0_14, %c0_15], %22 {strides = array<i32>} : memref<2x4x8xf32, #tpu.memory_space<vmem>>, vector<2x4x8xf32>,
    return
  }
  func.func @transform_0(%arg0: i32) -> (i32, i32, i32) {
    %c0_i32 = arith.constant 0 : i32
    %c0_i32_0 = arith.constant 0 : i32
    %c0_i32_1 = arith.constant 0 : i32
    return %arg0, %c0_i32, %c0_i32_0 : i32, i32, i32
  }
  func.func @transform_1(%arg0: i32) -> (i32, i32, i32) {
    %c0_i32 = arith.constant 0 : i32
    %c0_i32_0 = arith.constant 0 : i32
    %c0_i32_1 = arith.constant 0 : i32
    return %arg0, %c0_i32, %c0_i32_0 : i32, i32, i32
  }
  func.func @transform_2(%arg0: i32) -> (i32, i32, i32) {
    %c0_i32 = arith.constant 0 : i32
    %c0_i32_0 = arith.constant 0 : i32
    %c0_i32_1 = arith.constant 0 : i32
    return %arg0, %c0_i32, %c0_i32_0 : i32, i32, i32
  }
  func.func @transform_3(%arg0: i32) -> (i32, i32, i32) {
    %c0_i32 = arith.constant 0 : i32
    %c0_i32_0 = arith.constant 0 : i32
    %c0_i32_1 = arith.constant 0 : i32
    return %arg0, %c0_i32, %c0_i32_0 : i32, i32, i32
  }
}

</mosaic_0001>

<llo_original>
// kernel: tpu_custom_call.1
$region0: #{tpu_custom_call.1}
  #allocation0 [shape = 'u32[]', space=smem, size = 0x4, offset = 0x4, fixed_abs, tag = 'smem constant byte address 0x4 - core index']
  #allocation1 [shape = 'u32[72,128]{1,0:T(1,128)}', space=vmem, size = 0x9000, scoped, tag = 'internal scratch']
  %s0 = inlined_call_operand.vmem [shape: f32[2,4,32], index: 0, kind: input, shape index: {}]
  %s1 = inlined_call_operand.vmem [shape: f32[2,32,8], index: 1, kind: input, shape index: {}]
  %s2 = inlined_call_operand.vmem [shape: s8[2,4,8], index: 2, kind: input, shape index: {}]
  %s3 = inlined_call_operand.hbm [shape: f32[2,4,8], index: 3, kind: output, shape index: {}]
  %s4 = sld [smem:[#allocation0]]
  $region22: #{tpu_custom_call.1} parent=0
    _
  %s6 = ssub.s32 1, %s4
  %s7 = scalar_select 0, %s6, %s4
  $region1: #{tpu_custom_call.1} parent=0
    #allocation2 [shape = 'u8[4096]{0}', space=vmem, size = 0x1000, scoped, tag = 'output window, operand 0, single buffered']
    #allocation3 [shape = 's32[1]{0}', space=sflag, size = 0x4, scoped, tag = 'scoped memory for tpu_custom_call.1']
    %8 = vsyncpa [#allocation3], 0
    // Predicated region
    $region2: #{tpu_custom_call.1} parent=1 // pred_check
      _
    $region3: #{tpu_custom_call.1} parent=1 // pred_check_branch
      %10 = sbr.rel (0) target = $region5
    $region4: #{tpu_custom_call.1} parent=1 // pred_region
      _
    $region5: #{tpu_custom_call.1} parent=1 // pred_fallthru
      _
    // Predicated region
    $region6: #{tpu_custom_call.1} parent=1 // pred_check
      _
    $region7: #{tpu_custom_call.1} parent=1 // pred_check_branch
      %12 = sbr.rel (0) target = $region9
    $region8: #{tpu_custom_call.1} parent=1 // pred_region
      _
    $region9: #{tpu_custom_call.1} parent=1 // pred_fallthru
      _
    // Predicated region
    $region10: #{tpu_custom_call.1} parent=1 // pred_check
      _
    $region11: #{tpu_custom_call.1} parent=1 // pred_check_branch
      %14 = sbr.rel (0) target = $region13
    $region12: #{tpu_custom_call.1} parent=1 // pred_region
      _
    $region13: #{tpu_custom_call.1} parent=1 // pred_fallthru
      _
    %v17 = vld [vmem:[%s0] sm:$0xf]
    %v18 = vld [vmem:[%s0 + $0x4] sm:$0xf]
    %v19 = vmul.f32 %v17, 0.35355338
    %v20 = vmul.f32 %v18, 0.35355338
    %v21 = vld [vmem:[%s1] sm:$0xff]
    %v22 = vld [vmem:[%s1 + $0x8] sm:$0xff]
    %v23 = vld [vmem:[%s1 + $0x10] sm:$0xff]
    %v24 = vld [vmem:[%s1 + $0x18] sm:$0xff]
    %v25 = vld [vmem:[%s1 + $0x20] sm:$0xff]
    %v26 = vld [vmem:[%s1 + $0x28] sm:$0xff]
    %v27 = vld [vmem:[%s1 + $0x30] sm:$0xff]
    %v28 = vld [vmem:[%s1 + $0x38] sm:$0xff]
    %vm29 = vcmask 261120
    %v31 = vsel %vm29, %v19, 0
    %33 = vmatpush.msra.mxu0 0.0
    %34 = vmatpush.msra.mxu0 0.0
    %35 = vmatpush.msra.mxu0 0.0
    %36 = vmatpush.msra.mxu0 0.0
    %37 = vmatpush.msra.mxu0 0.0
    %38 = vmatpush.msra.mxu0 0.0
    %39 = vmatpush.msra.mxu0 0.0
    %40 = vmatpush.msra.mxu0 0.0
    %41 = vmatpush.msra.mxu0 0.0
    %42 = vmatpush.msra.mxu0 0.0
    %43 = vmatpush.msra.mxu0 0.0
    %44 = vmatpush.msra.mxu0 0.0
    %45 = vmatpush.msra.mxu0 %v24
    %46 = vmatpush.msra.mxu0 %v23
    %47 = vmatpush.msra.mxu0 %v22
    %48 = vmatpush.msra.mxu0 %v21
    %49 = vmatmul.f32.gmra.mxu0 %v31
    %v50 = vpop.f32.mrf.mxu0
    %v51 = vadd.f32 0.0, %v50
    %52 = vdwg.mxu0
    %v54 = vsel %vm29, %v20, 0
    %56 = vmatpush.msra.mxu0 0.0
    %57 = vmatpush.msra.mxu0 0.0
    %58 = vmatpush.msra.mxu0 0.0
    %59 = vmatpush.msra.mxu0 0.0
    %60 = vmatpush.msra.mxu0 0.0
    %61 = vmatpush.msra.mxu0 0.0
    %62 = vmatpush.msra.mxu0 0.0
    %63 = vmatpush.msra.mxu0 0.0
    %64 = vmatpush.msra.mxu0 0.0
    %65 = vmatpush.msra.mxu0 0.0
    %66 = vmatpush.msra.mxu0 0.0
    %67 = vmatpush.msra.mxu0 0.0
    %68 = vmatpush.msra.mxu0 %v28
    %69 = vmatpush.msra.mxu0 %v27
    %70 = vmatpush.msra.mxu0 %v26
    %71 = vmatpush.msra.mxu0 %v25
    %72 = vmatmul.f32.gmra.mxu0 %v54
    %v73 = vpop.f32.mrf.mxu0
    %v74 = vadd.f32 0.0, %v73
    %75 = vdwg.mxu0
    %v76 = vtanh.pop %v51
    %v77 = vtanh.pop %v74
    %v78 = vmul.f32 %v76, 10.0
    %v79 = vmul.f32 %v77, 10.0
    %v80 = vld [vmem:[%s2] sm:$0x1]
    %v81 = vld [vmem:[%s2 + $0x1] sm:$0x1]
    %vm82 = vnez %v80
    %vm83 = vnez %v81
    %v84 = vsel %vm82, 16843009, 0
    %v85 = vsel %vm83, 16843009, 0
    %v86 = vunpack.c.0.s8 %v84
    %v87 = vunpack.c.0.s8 %v85
    %vm88 = vcmp.ne.s32.totalorder %v86, 0
    %vm89 = vcmp.ne.s32.totalorder %v87, 0
    %v90 = vsel %vm88, -inf, %v78
    %v91 = vsel %vm89, -inf, %v79
    %vm92 = vcmask 60416
    %v93 = vsel %vm92, %v90, -inf
    %94 = vmax.xlane.f32.xlu0 %v93
    %v95 = vpop.xlane.xlu0 %94
    %v96 = vsel %vm92, %v91, -inf
    %97 = vmax.xlane.f32.xlu0 %v96
    %v98 = vpop.xlane.xlu0 %97
    %v99 = vsub.f32 %v90, %v95
    %v100 = vsub.f32 %v91, %v98
    %v101 = vmul.f32 %v99, 1.442695
    %v102 = vpow.pop %v101
    %v103 = vmul.f32 %v100, 1.442695
    %v104 = vpow.pop %v103
    %v105 = vsel %vm92, %v102, 0.0
    %106 = vadd.xlane.f32.xlu0 %v105
    %v107 = vpop.xlane.xlu0 %106
    %v108 = vsel %vm92, %v104, 0.0
    %109 = vadd.xlane.f32.xlu0 %v108
    %v110 = vpop.xlane.xlu0 %109
    %v111 = vlog2.pop %v107
    %v112 = vmul.f32 %v111, 0.6931472
    %v113 = vlog2.pop %v110
    %v114 = vmul.f32 %v113, 0.6931472
    %v115 = vsub.f32 %v99, %v112
    %v116 = vsub.f32 %v100, %v114
    %117 = vst.msk [vmem:[#allocation2] sm:$0xf] %vm92, %v115
    %118 = vst.msk [vmem:[#allocation2 + $0x4] sm:$0xf] %vm92, %v116
    // Predicated region
    $region14: #{tpu_custom_call.1} parent=1 // pred_check
      _
    $region15: #{tpu_custom_call.1} parent=1 // pred_check_branch
      %120 = sbr.rel (0) target = $region17
    $region16: #{tpu_custom_call.1} parent=1 // pred_region
      %122 = vsyncadd [#allocation3], 0
      %s123 = sshll.u32 [#allocation2], 4
      %s124 = int_to_ptr.vmem [resolvable:$true] %s123
      %s125 = sshll.u32 %s3, 4
      %s126 = int_to_ptr.hbm [resolvable:$true] %s125
      %131 = dma.vmem_to_hbm [thread:$0]  %s124, 128, %s126, [#allocation3], 64, 64, 4
    $region17: #{tpu_custom_call.1} parent=1 // pred_fallthru
      _
    // Predicated region
    $region18: #{tpu_custom_call.1} parent=1 // pred_check
      _
    $region19: #{tpu_custom_call.1} parent=1 // pred_check_branch
      %133 = sbr.rel (0) target = $region21
    $region20: #{tpu_custom_call.1} parent=1 // pred_region
      %135 = dma.done [#allocation3], 128
    $region21: #{tpu_custom_call.1} parent=1 // pred_fallthru
      _
    %136 = vsyncpa [#allocation3], 1

</llo_original>
